<compile_context>
chip_gen: v6e
topology: v6e:2x2x1
jax: 0.10.0
libtpu: 0.0.40
codegen_flags: <defaults>
</compile_context>

<pallas_src>
import functools

import jax
import jax.numpy as jnp
import numpy as np
from jax.experimental import pallas as pl
from jax.experimental.pallas import tpu as pltpu


def _adaptive_bins(in_size: int, out_size: int):
    """PyTorch AdaptiveMaxPool2d bin edges: [floor(i*I/O), ceil((i+1)*I/O))."""
    starts = [(i * in_size) // out_size for i in range(out_size)]
    ends = [-(-((i + 1) * in_size) // out_size) for i in range(out_size)]  # ceil div
    return starts, ends


def _pyramid_kernel(x_ref, o_ref, *, pool_dims, offsets):
    # x_ref block: (Nb, H, W, Cb) channels-last.
    # o_ref block: (Nb, sum(p*p), Cb) — bin-major, channels on lanes.
    _, H, W, _ = x_ref.shape
    finest_p = max(pool_dims)
    want_gmax = (1 in pool_dims) and finest_p > 1
    gmax = None

    # Process levels finest-first so the 1x1 level can reuse the finest bins.
    order = sorted(range(len(pool_dims)), key=lambda k: -pool_dims[k])
    for k in order:
        p = pool_dims[k]
        off = offsets[k]

        if p == 1 and gmax is not None:
            # Global max == max over the (covering) bins of the finest level.
            o_ref[:, off, :] = gmax.astype(o_ref.dtype)
            continue

        hs, he = _adaptive_bins(H, p)
        ws, we = _adaptive_bins(W, p)
        for i in range(p):
            # Separable step 1: elementwise (VPU) max across the rows of this
            # H-bin; reads the slice straight from the VMEM-resident block.
            hred = jnp.max(x_ref[:, hs[i]:he[i], :, :], axis=1)      # (Nb, W, Cb)
            for j in range(p):
                # Separable step 2: small reduce over the W-bin sublanes.
                b = jnp.max(hred[:, ws[j]:we[j], :], axis=1)         # (Nb, Cb)
                # Direct store of this bin into the lane-dense output slab.
                o_ref[:, off + i * p + j, :] = b.astype(o_ref.dtype)
                if want_gmax and p == finest_p:
                    gmax = b if gmax is None else jnp.maximum(gmax, b)


def pyramid_pooling_2d(x, pool_dims, *, block_budget_bytes=4 * 1024 * 1024,
                       vmem_limit_bytes=32 * 1024 * 1024):
    """Pallas implementation of PyramidPooling2d.forward (NCHW input)."""
    N, C, H, W = x.shape
    pool_dims = tuple(int(p) for p in pool_dims)

    sizes = [p * p for p in pool_dims]
    offsets, acc = [], 0
    for s in sizes:
        offsets.append(acc)
        acc += s
    p_total = acc
    offsets = tuple(offsets)

    # One-time layout change: channels-last so C maps to the 128-lane axis.
    x_nhwc = jnp.transpose(x, (0, 2, 3, 1))                           # (N, H, W, C)
    itemsize = np.dtype(x.dtype).itemsize

    # Channel tile: only split C when a single image exceeds the block budget
    # and C is 128-aligned (keeps the lane-dim block constraint satisfied).
    cb = C
    if H * W * C * itemsize > block_budget_bytes and C % 128 == 0:
        cb = 128
        while (cb * 2 <= C and C % (cb * 2) == 0
               and H * W * cb * 2 * itemsize <= block_budget_bytes):
            cb *= 2

    # Batch tile: amortize the ~0.35us per-grid-step overhead.
    per_img = H * W * cb * itemsize
    nb = max(1, min(N, block_budget_bytes // max(per_img, 1)))
    while N % nb:
        nb -= 1
    # Keep >=2 parallel grid steps when possible (feeds both v7x TensorCores).
    if (N // nb) * (C // cb) < 2 and nb > 1:
        nb = max(1, nb // 2)
        while N % nb:
            nb -= 1

    grid = (N // nb, C // cb)
    kernel = functools.partial(_pyramid_kernel, pool_dims=pool_dims,
                               offsets=offsets)

    out = pl.pallas_call(
        kernel,
        out_shape=jax.ShapeDtypeStruct((N, p_total, C), x.dtype),
        grid=grid,
        in_specs=[pl.BlockSpec((nb, H, W, cb), lambda n, c: (n, 0, 0, c))],
        out_specs=pl.BlockSpec((nb, p_total, cb), lambda n, c: (n, 0, c)),
        compiler_params=pltpu.CompilerParams(
            dimension_semantics=("parallel", "parallel"),
            vmem_limit_bytes=vmem_limit_bytes,
        ),
    )(x_nhwc)

    # Glue to match torch.cat([pool(x).view(N, -1) for pool in ...], 1):
    # per level, go from bin-major (N, p*p, C) to channel-major (N, C*p*p).
    pieces = []
    for k, p in enumerate(pool_dims):
        lvl = out[:, offsets[k]:offsets[k] + p * p, :]                # (N, p*p, C)
        pieces.append(jnp.transpose(lvl, (0, 2, 1)).reshape(N, C * p * p))
    return jnp.concatenate(pieces, axis=1)


def _reference_pyramid_pooling_2d(x, pool_dims):
    """Pure-JAX reference mirroring torch AdaptiveMaxPool2d semantics."""
    N, C, H, W = x.shape
    outs = []
    for p in pool_dims:
        hs, he = _adaptive_bins(H, p)
        ws, we = _adaptive_bins(W, p)
        o = jnp.stack(
            [
                jnp.stack(
                    [
                        x[:, :, hs[i]:he[i], ws[j]:we[j]].max(axis=(2, 3))
                        for j in range(p)
                    ],
                    axis=-1,
                )
                for i in range(p)
            ],
            axis=-2,
        )  # (N, C, p, p)
        outs.append(o.reshape(N, -1))
    return jnp.concatenate(outs, axis=1)


if __name__ == "__main__":
    # Module has no learnable parameters; pool_dims is the only config.
    pool_dims = [1, 2, 3, 4]  # includes a non-divisible level (3) to exercise
    # the exact adaptive (overlapping-bin) semantics.

    key = jax.random.PRNGKey(0)
    x = jax.random.normal(key, (2, 4, 16, 16), dtype=jnp.float32)  # NCHW

    out = pyramid_pooling_2d(x, pool_dims)
    out = jax.block_until_ready(out)

    expected = _reference_pyramid_pooling_2d(x, pool_dims)
    assert out.shape == (2, 4 * sum(p * p for p in pool_dims)), out.shape
    np.testing.assert_allclose(np.asarray(out), np.asarray(expected), rtol=0, atol=0)

    print("KERNEL_OK")
</pallas_src>

<mosaic_0001>
module attributes {stable_mosaic.version = 11 : i64} {
  func.func @_pyramid_kernel(%arg0: i32, %arg1: i32, %arg2: memref<1x16x16x4xf32, #tpu.memory_space<vmem>>, %arg3: memref<1x30x4xf32, #tpu.memory_space<vmem>>) attributes {dimension_semantics = [#tpu.dimension_semantics<parallel>, #tpu.dimension_semantics<parallel>], iteration_bounds = array<i64: 2, 1>, scalar_prefetch = 0 : i64, scratch_operands = 0 : i64, tpu.core_type = #tpu.core_type<tc>, window_params = [{transform_indices = @transform_0, window_bounds = array<i64: 1, 16, 16, 4>}, {transform_indices = @transform_1, window_bounds = array<i64: 1, 30, 4>}]} {
    %c0 = arith.constant 0 : index
    %c0_0 = arith.constant 0 : index
    %c0_1 = arith.constant 0 : index
    %c0_2 = arith.constant 0 : index
    %0 = vector.load %arg2[%c0, %c0_0, %c0_1, %c0_2] : memref<1x16x16x4xf32, #tpu.memory_space<vmem>>, vector<1x4x16x4xf32>
    %cst = arith.constant dense<0xFF800000> : vector<1x16x4xf32>
    %1 = vector.multi_reduction <maximumf>, %0, %cst [1] : vector<1x4x16x4xf32> to vector<1x16x4xf32>
    %2 = vector.extract_strided_slice %1 {offsets = [0, 0, 0], sizes = [1, 4, 4], strides = [1, 1, 1]} : vector<1x16x4xf32> to vector<1x4x4xf32>
    %cst_3 = arith.constant dense<0xFF800000> : vector<1x4xf32>
    %3 = vector.multi_reduction <maximumf>, %2, %cst_3 [1] : vector<1x4x4xf32> to vector<1x4xf32>
    %c0_4 = arith.constant 0 : index
    %c14 = arith.constant 14 : index
    %c0_5 = arith.constant 0 : index
    %4 = vector.load %arg3[%c0_4, %c14, %c0_5] : memref<1x30x4xf32, #tpu.memory_space<vmem>>, vector<1x1x4xf32>
    %5 = vector.shape_cast %4 : vector<1x1x4xf32> to vector<1x4xf32>
    %6 = vector.shape_cast %3 : vector<1x4xf32> to vector<1x1x4xf32>
    tpu.vector_store %arg3[%c0_4, %c14, %c0_5], %6 {strides = array<i32>} : memref<1x30x4xf32, #tpu.memory_space<vmem>>, vector<1x1x4xf32>,
    %7 = vector.extract_strided_slice %1 {offsets = [0, 4, 0], sizes = [1, 4, 4], strides = [1, 1, 1]} : vector<1x16x4xf32> to vector<1x4x4xf32>
    %cst_6 = arith.constant dense<0xFF800000> : vector<1x4xf32>
    %8 = vector.multi_reduction <maximumf>, %7, %cst_6 [1] : vector<1x4x4xf32> to vector<1x4xf32>
    %c0_7 = arith.constant 0 : index
    %c15 = arith.constant 15 : index
    %c0_8 = arith.constant 0 : index
    %9 = vector.load %arg3[%c0_7, %c15, %c0_8] : memref<1x30x4xf32, #tpu.memory_space<vmem>>, vector<1x1x4xf32>
    %10 = vector.shape_cast %9 : vector<1x1x4xf32> to vector<1x4xf32>
    %11 = vector.shape_cast %8 : vector<1x4xf32> to vector<1x1x4xf32>
    tpu.vector_store %arg3[%c0_7, %c15, %c0_8], %11 {strides = array<i32>} : memref<1x30x4xf32, #tpu.memory_space<vmem>>, vector<1x1x4xf32>,
    %12 = arith.maximumf %3, %8 : vector<1x4xf32>
    %13 = vector.extract_strided_slice %1 {offsets = [0, 8, 0], sizes = [1, 4, 4], strides = [1, 1, 1]} : vector<1x16x4xf32> to vector<1x4x4xf32>
    %cst_9 = arith.constant dense<0xFF800000> : vector<1x4xf32>
    %14 = vector.multi_reduction <maximumf>, %13, %cst_9 [1] : vector<1x4x4xf32> to vector<1x4xf32>
    %c0_10 = arith.constant 0 : index
    %c16 = arith.constant 16 : index
    %c0_11 = arith.constant 0 : index
    %15 = vector.load %arg3[%c0_10, %c16, %c0_11] : memref<1x30x4xf32, #tpu.memory_space<vmem>>, vector<1x1x4xf32>
    %16 = vector.shape_cast %15 : vector<1x1x4xf32> to vector<1x4xf32>
    %17 = vector.shape_cast %14 : vector<1x4xf32> to vector<1x1x4xf32>
    tpu.vector_store %arg3[%c0_10, %c16, %c0_11], %17 {strides = array<i32>} : memref<1x30x4xf32, #tpu.memory_space<vmem>>, vector<1x1x4xf32>,
    %18 = arith.maximumf %12, %14 : vector<1x4xf32>
    %19 = vector.extract_strided_slice %1 {offsets = [0, 12, 0], sizes = [1, 4, 4], strides = [1, 1, 1]} : vector<1x16x4xf32> to vector<1x4x4xf32>
    %cst_12 = arith.constant dense<0xFF800000> : vector<1x4xf32>
    %20 = vector.multi_reduction <maximumf>, %19, %cst_12 [1] : vector<1x4x4xf32> to vector<1x4xf32>
    %c0_13 = arith.constant 0 : index
    %c17 = arith.constant 17 : index
    %c0_14 = arith.constant 0 : index
    %21 = vector.load %arg3[%c0_13, %c17, %c0_14] : memref<1x30x4xf32, #tpu.memory_space<vmem>>, vector<1x1x4xf32>
    %22 = vector.shape_cast %21 : vector<1x1x4xf32> to vector<1x4xf32>
    %23 = vector.shape_cast %20 : vector<1x4xf32> to vector<1x1x4xf32>
    tpu.vector_store %arg3[%c0_13, %c17, %c0_14], %23 {strides = array<i32>} : memref<1x30x4xf32, #tpu.memory_space<vmem>>, vector<1x1x4xf32>,
    %24 = arith.maximumf %18, %20 : vector<1x4xf32>
    %c0_15 = arith.constant 0 : index
    %c4 = arith.constant 4 : index
    %c0_16 = arith.constant 0 : index
    %c0_17 = arith.constant 0 : index
    %25 = vector.load %arg2[%c0_15, %c4, %c0_16, %c0_17] : memref<1x16x16x4xf32, #tpu.memory_space<vmem>>, vector<1x4x16x4xf32>
    %cst_18 = arith.constant dense<0xFF800000> : vector<1x16x4xf32>
    %26 = vector.multi_reduction <maximumf>, %25, %cst_18 [1] : vector<1x4x16x4xf32> to vector<1x16x4xf32>
    %27 = vector.extract_strided_slice %26 {offsets = [0, 0, 0], sizes = [1, 4, 4], strides = [1, 1, 1]} : vector<1x16x4xf32> to vector<1x4x4xf32>
    %cst_19 = arith.constant dense<0xFF800000> : vector<1x4xf32>
    %28 = vector.multi_reduction <maximumf>, %27, %cst_19 [1] : vector<1x4x4xf32> to vector<1x4xf32>
    %c0_20 = arith.constant 0 : index
    %c18 = arith.constant 18 : index
    %c0_21 = arith.constant 0 : index
    %29 = vector.load %arg3[%c0_20, %c18, %c0_21] : memref<1x30x4xf32, #tpu.memory_space<vmem>>, vector<1x1x4xf32>
    %30 = vector.shape_cast %29 : vector<1x1x4xf32> to vector<1x4xf32>
    %31 = vector.shape_cast %28 : vector<1x4xf32> to vector<1x1x4xf32>
    tpu.vector_store %arg3[%c0_20, %c18, %c0_21], %31 {strides = array<i32>} : memref<1x30x4xf32, #tpu.memory_space<vmem>>, vector<1x1x4xf32>,
    %32 = arith.maximumf %24, %28 : vector<1x4xf32>
    %33 = vector.extract_strided_slice %26 {offsets = [0, 4, 0], sizes = [1, 4, 4], strides = [1, 1, 1]} : vector<1x16x4xf32> to vector<1x4x4xf32>
    %cst_22 = arith.constant dense<0xFF800000> : vector<1x4xf32>
    %34 = vector.multi_reduction <maximumf>, %33, %cst_22 [1] : vector<1x4x4xf32> to vector<1x4xf32>
    %c0_23 = arith.constant 0 : index
    %c19 = arith.constant 19 : index
    %c0_24 = arith.constant 0 : index
    %35 = vector.load %arg3[%c0_23, %c19, %c0_24] : memref<1x30x4xf32, #tpu.memory_space<vmem>>, vector<1x1x4xf32>
    %36 = vector.shape_cast %35 : vector<1x1x4xf32> to vector<1x4xf32>
    %37 = vector.shape_cast %34 : vector<1x4xf32> to vector<1x1x4xf32>
    tpu.vector_store %arg3[%c0_23, %c19, %c0_24], %37 {strides = array<i32>} : memref<1x30x4xf32, #tpu.memory_space<vmem>>, vector<1x1x4xf32>,
    %38 = arith.maximumf %32, %34 : vector<1x4xf32>
    %39 = vector.extract_strided_slice %26 {offsets = [0, 8, 0], sizes = [1, 4, 4], strides = [1, 1, 1]} : vector<1x16x4xf32> to vector<1x4x4xf32>
    %cst_25 = arith.constant dense<0xFF800000> : vector<1x4xf32>
    %40 = vector.multi_reduction <maximumf>, %39, %cst_25 [1] : vector<1x4x4xf32> to vector<1x4xf32>
    %c0_26 = arith.constant 0 : index
    %c20 = arith.constant 20 : index
    %c0_27 = arith.constant 0 : index
    %41 = vector.load %arg3[%c0_26, %c20, %c0_27] : memref<1x30x4xf32, #tpu.memory_space<vmem>>, vector<1x1x4xf32>
    %42 = vector.shape_cast %41 : vector<1x1x4xf32> to vector<1x4xf32>
    %43 = vector.shape_cast %40 : vector<1x4xf32> to vector<1x1x4xf32>
    tpu.vector_store %arg3[%c0_26, %c20, %c0_27], %43 {strides = array<i32>} : memref<1x30x4xf32, #tpu.memory_space<vmem>>, vector<1x1x4xf32>,
    %44 = arith.maximumf %38, %40 : vector<1x4xf32>
    %45 = vector.extract_strided_slice %26 {offsets = [0, 12, 0], sizes = [1, 4, 4], strides = [1, 1, 1]} : vector<1x16x4xf32> to vector<1x4x4xf32>
    %cst_28 = arith.constant dense<0xFF800000> : vector<1x4xf32>
    %46 = vector.multi_reduction <maximumf>, %45, %cst_28 [1] : vector<1x4x4xf32> to vector<1x4xf32>
    %c0_29 = arith.constant 0 : index
    %c21 = arith.constant 21 : index
    %c0_30 = arith.constant 0 : index
    %47 = vector.load %arg3[%c0_29, %c21, %c0_30] : memref<1x30x4xf32, #tpu.memory_space<vmem>>, vector<1x1x4xf32>
    %48 = vector.shape_cast %47 : vector<1x1x4xf32> to vector<1x4xf32>
    %49 = vector.shape_cast %46 : vector<1x4xf32> to vector<1x1x4xf32>
    tpu.vector_store %arg3[%c0_29, %c21, %c0_30], %49 {strides = array<i32>} : memref<1x30x4xf32, #tpu.memory_space<vmem>>, vector<1x1x4xf32>,
    %50 = arith.maximumf %44, %46 : vector<1x4xf32>
    %c0_31 = arith.constant 0 : index
    %c8 = arith.constant 8 : index
    %c0_32 = arith.constant 0 : index
    %c0_33 = arith.constant 0 : index
    %51 = vector.load %arg2[%c0_31, %c8, %c0_32, %c0_33] : memref<1x16x16x4xf32, #tpu.memory_space<vmem>>, vector<1x4x16x4xf32>
    %cst_34 = arith.constant dense<0xFF800000> : vector<1x16x4xf32>
    %52 = vector.multi_reduction <maximumf>, %51, %cst_34 [1] : vector<1x4x16x4xf32> to vector<1x16x4xf32>
    %53 = vector.extract_strided_slice %52 {offsets = [0, 0, 0], sizes = [1, 4, 4], strides = [1, 1, 1]} : vector<1x16x4xf32> to vector<1x4x4xf32>
    %cst_35 = arith.constant dense<0xFF800000> : vector<1x4xf32>
    %54 = vector.multi_reduction <maximumf>, %53, %cst_35 [1] : vector<1x4x4xf32> to vector<1x4xf32>
    %c0_36 = arith.constant 0 : index
    %c22 = arith.constant 22 : index
    %c0_37 = arith.constant 0 : index
    %55 = vector.load %arg3[%c0_36, %c22, %c0_37] : memref<1x30x4xf32, #tpu.memory_space<vmem>>, vector<1x1x4xf32>
    %56 = vector.shape_cast %55 : vector<1x1x4xf32> to vector<1x4xf32>
    %57 = vector.shape_cast %54 : vector<1x4xf32> to vector<1x1x4xf32>
    tpu.vector_store %arg3[%c0_36, %c22, %c0_37], %57 {strides = array<i32>} : memref<1x30x4xf32, #tpu.memory_space<vmem>>, vector<1x1x4xf32>,
    %58 = arith.maximumf %50, %54 : vector<1x4xf32>
    %59 = vector.extract_strided_slice %52 {offsets = [0, 4, 0], sizes = [1, 4, 4], strides = [1, 1, 1]} : vector<1x16x4xf32> to vector<1x4x4xf32>
    %cst_38 = arith.constant dense<0xFF800000> : vector<1x4xf32>
    %60 = vector.multi_reduction <maximumf>, %59, %cst_38 [1] : vector<1x4x4xf32> to vector<1x4xf32>
    %c0_39 = arith.constant 0 : index
    %c23 = arith.constant 23 : index
    %c0_40 = arith.constant 0 : index
    %61 = vector.load %arg3[%c0_39, %c23, %c0_40] : memref<1x30x4xf32, #tpu.memory_space<vmem>>, vector<1x1x4xf32>
    %62 = vector.shape_cast %61 : vector<1x1x4xf32> to vector<1x4xf32>
    %63 = vector.shape_cast %60 : vector<1x4xf32> to vector<1x1x4xf32>
    tpu.vector_store %arg3[%c0_39, %c23, %c0_40], %63 {strides = array<i32>} : memref<1x30x4xf32, #tpu.memory_space<vmem>>, vector<1x1x4xf32>,
    %64 = arith.maximumf %58, %60 : vector<1x4xf32>
    %65 = vector.extract_strided_slice %52 {offsets = [0, 8, 0], sizes = [1, 4, 4], strides = [1, 1, 1]} : vector<1x16x4xf32> to vector<1x4x4xf32>
    %cst_41 = arith.constant dense<0xFF800000> : vector<1x4xf32>
    %66 = vector.multi_reduction <maximumf>, %65, %cst_41 [1] : vector<1x4x4xf32> to vector<1x4xf32>
    %c0_42 = arith.constant 0 : index
    %c24 = arith.constant 24 : index
    %c0_43 = arith.constant 0 : index
    %67 = vector.load %arg3[%c0_42, %c24, %c0_43] : memref<1x30x4xf32, #tpu.memory_space<vmem>>, vector<1x1x4xf32>
    %68 = vector.shape_cast %67 : vector<1x1x4xf32> to vector<1x4xf32>
    %69 = vector.shape_cast %66 : vector<1x4xf32> to vector<1x1x4xf32>
    tpu.vector_store %arg3[%c0_42, %c24, %c0_43], %69 {strides = array<i32>} : memref<1x30x4xf32, #tpu.memory_space<vmem>>, vector<1x1x4xf32>,
    %70 = arith.maximumf %64, %66 : vector<1x4xf32>
    %71 = vector.extract_strided_slice %52 {offsets = [0, 12, 0], sizes = [1, 4, 4], strides = [1, 1, 1]} : vector<1x16x4xf32> to vector<1x4x4xf32>
    %cst_44 = arith.constant dense<0xFF800000> : vector<1x4xf32>
    %72 = vector.multi_reduction <maximumf>, %71, %cst_44 [1] : vector<1x4x4xf32> to vector<1x4xf32>
    %c0_45 = arith.constant 0 : index
    %c25 = arith.constant 25 : index
    %c0_46 = arith.constant 0 : index
    %73 = vector.load %arg3[%c0_45, %c25, %c0_46] : memref<1x30x4xf32, #tpu.memory_space<vmem>>, vector<1x1x4xf32>
    %74 = vector.shape_cast %73 : vector<1x1x4xf32> to vector<1x4xf32>
    %75 = vector.shape_cast %72 : vector<1x4xf32> to vector<1x1x4xf32>
    tpu.vector_store %arg3[%c0_45, %c25, %c0_46], %75 {strides = array<i32>} : memref<1x30x4xf32, #tpu.memory_space<vmem>>, vector<1x1x4xf32>,
    %76 = arith.maximumf %70, %72 : vector<1x4xf32>
    %c0_47 = arith.constant 0 : index
    %c12 = arith.constant 12 : index
    %c0_48 = arith.constant 0 : index
    %c0_49 = arith.constant 0 : index
    %77 = vector.load %arg2[%c0_47, %c12, %c0_48, %c0_49] : memref<1x16x16x4xf32, #tpu.memory_space<vmem>>, vector<1x4x16x4xf32>
    %cst_50 = arith.constant dense<0xFF800000> : vector<1x16x4xf32>
    %78 = vector.multi_reduction <maximumf>, %77, %cst_50 [1] : vector<1x4x16x4xf32> to vector<1x16x4xf32>
    %79 = vector.extract_strided_slice %78 {offsets = [0, 0, 0], sizes = [1, 4, 4], strides = [1, 1, 1]} : vector<1x16x4xf32> to vector<1x4x4xf32>
    %cst_51 = arith.constant dense<0xFF800000> : vector<1x4xf32>
    %80 = vector.multi_reduction <maximumf>, %79, %cst_51 [1] : vector<1x4x4xf32> to vector<1x4xf32>
    %c0_52 = arith.constant 0 : index
    %c26 = arith.constant 26 : index
    %c0_53 = arith.constant 0 : index
    %81 = vector.load %arg3[%c0_52, %c26, %c0_53] : memref<1x30x4xf32, #tpu.memory_space<vmem>>, vector<1x1x4xf32>
    %82 = vector.shape_cast %81 : vector<1x1x4xf32> to vector<1x4xf32>
    %83 = vector.shape_cast %80 : vector<1x4xf32> to vector<1x1x4xf32>
    tpu.vector_store %arg3[%c0_52, %c26, %c0_53], %83 {strides = array<i32>} : memref<1x30x4xf32, #tpu.memory_space<vmem>>, vector<1x1x4xf32>,
    %84 = arith.maximumf %76, %80 : vector<1x4xf32>
    %85 = vector.extract_strided_slice %78 {offsets = [0, 4, 0], sizes = [1, 4, 4], strides = [1, 1, 1]} : vector<1x16x4xf32> to vector<1x4x4xf32>
    %cst_54 = arith.constant dense<0xFF800000> : vector<1x4xf32>
    %86 = vector.multi_reduction <maximumf>, %85, %cst_54 [1] : vector<1x4x4xf32> to vector<1x4xf32>
    %c0_55 = arith.constant 0 : index
    %c27 = arith.constant 27 : index
    %c0_56 = arith.constant 0 : index
    %87 = vector.load %arg3[%c0_55, %c27, %c0_56] : memref<1x30x4xf32, #tpu.memory_space<vmem>>, vector<1x1x4xf32>
    %88 = vector.shape_cast %87 : vector<1x1x4xf32> to vector<1x4xf32>
    %89 = vector.shape_cast %86 : vector<1x4xf32> to vector<1x1x4xf32>
    tpu.vector_store %arg3[%c0_55, %c27, %c0_56], %89 {strides = array<i32>} : memref<1x30x4xf32, #tpu.memory_space<vmem>>, vector<1x1x4xf32>,
    %90 = arith.maximumf %84, %86 : vector<1x4xf32>
    %91 = vector.extract_strided_slice %78 {offsets = [0, 8, 0], sizes = [1, 4, 4], strides = [1, 1, 1]} : vector<1x16x4xf32> to vector<1x4x4xf32>
    %cst_57 = arith.constant dense<0xFF800000> : vector<1x4xf32>
    %92 = vector.multi_reduction <maximumf>, %91, %cst_57 [1] : vector<1x4x4xf32> to vector<1x4xf32>
    %c0_58 = arith.constant 0 : index
    %c28 = arith.constant 28 : index
    %c0_59 = arith.constant 0 : index
    %93 = vector.load %arg3[%c0_58, %c28, %c0_59] : memref<1x30x4xf32, #tpu.memory_space<vmem>>, vector<1x1x4xf32>
    %94 = vector.shape_cast %93 : vector<1x1x4xf32> to vector<1x4xf32>
    %95 = vector.shape_cast %92 : vector<1x4xf32> to vector<1x1x4xf32>
    tpu.vector_store %arg3[%c0_58, %c28, %c0_59], %95 {strides = array<i32>} : memref<1x30x4xf32, #tpu.memory_space<vmem>>, vector<1x1x4xf32>,
    %96 = arith.maximumf %90, %92 : vector<1x4xf32>
    %97 = vector.extract_strided_slice %78 {offsets = [0, 12, 0], sizes = [1, 4, 4], strides = [1, 1, 1]} : vector<1x16x4xf32> to vector<1x4x4xf32>
    %cst_60 = arith.constant dense<0xFF800000> : vector<1x4xf32>
    %98 = vector.multi_reduction <maximumf>, %97, %cst_60 [1] : vector<1x4x4xf32> to vector<1x4xf32>
    %c0_61 = arith.constant 0 : index
    %c29 = arith.constant 29 : index
    %c0_62 = arith.constant 0 : index
    %99 = vector.load %arg3[%c0_61, %c29, %c0_62] : memref<1x30x4xf32, #tpu.memory_space<vmem>>, vector<1x1x4xf32>
    %100 = vector.shape_cast %99 : vector<1x1x4xf32> to vector<1x4xf32>
    %101 = vector.shape_cast %98 : vector<1x4xf32> to vector<1x1x4xf32>
    tpu.vector_store %arg3[%c0_61, %c29, %c0_62], %101 {strides = array<i32>} : memref<1x30x4xf32, #tpu.memory_space<vmem>>, vector<1x1x4xf32>,
    %102 = arith.maximumf %96, %98 : vector<1x4xf32>
    %c0_63 = arith.constant 0 : index
    %c0_64 = arith.constant 0 : index
    %c0_65 = arith.constant 0 : index
    %c0_66 = arith.constant 0 : index
    %103 = vector.load %arg2[%c0_63, %c0_64, %c0_65, %c0_66] : memref<1x16x16x4xf32, #tpu.memory_space<vmem>>, vector<1x6x16x4xf32>
    %cst_67 = arith.constant dense<0xFF800000> : vector<1x16x4xf32>
    %104 = vector.multi_reduction <maximumf>, %103, %cst_67 [1] : vector<1x6x16x4xf32> to vector<1x16x4xf32>
    %105 = vector.extract_strided_slice %104 {offsets = [0, 0, 0], sizes = [1, 6, 4], strides = [1, 1, 1]} : vector<1x16x4xf32> to vector<1x6x4xf32>
    %cst_68 = arith.constant dense<0xFF800000> : vector<1x4xf32>
    %106 = vector.multi_reduction <maximumf>, %105, %cst_68 [1] : vector<1x6x4xf32> to vector<1x4xf32>
    %c0_69 = arith.constant 0 : index
    %c5 = arith.constant 5 : index
    %c0_70 = arith.constant 0 : index
    %107 = vector.load %arg3[%c0_69, %c5, %c0_70] : memref<1x30x4xf32, #tpu.memory_space<vmem>>, vector<1x1x4xf32>
    %108 = vector.shape_cast %107 : vector<1x1x4xf32> to vector<1x4xf32>
    %109 = vector.shape_cast %106 : vector<1x4xf32> to vector<1x1x4xf32>
    tpu.vector_store %arg3[%c0_69, %c5, %c0_70], %109 {strides = array<i32>} : memref<1x30x4xf32, #tpu.memory_space<vmem>>, vector<1x1x4xf32>,
    %110 = vector.extract_strided_slice %104 {offsets = [0, 5, 0], sizes = [1, 6, 4], strides = [1, 1, 1]} : vector<1x16x4xf32> to vector<1x6x4xf32>
    %cst_71 = arith.constant dense<0xFF800000> : vector<1x4xf32>
    %111 = vector.multi_reduction <maximumf>, %110, %cst_71 [1] : vector<1x6x4xf32> to vector<1x4xf32>
    %c0_72 = arith.constant 0 : index
    %c6 = arith.constant 6 : index
    %c0_73 = arith.constant 0 : index
    %112 = vector.load %arg3[%c0_72, %c6, %c0_73] : memref<1x30x4xf32, #tpu.memory_space<vmem>>, vector<1x1x4xf32>
    %113 = vector.shape_cast %112 : vector<1x1x4xf32> to vector<1x4xf32>
    %114 = vector.shape_cast %111 : vector<1x4xf32> to vector<1x1x4xf32>
    tpu.vector_store %arg3[%c0_72, %c6, %c0_73], %114 {strides = array<i32>} : memref<1x30x4xf32, #tpu.memory_space<vmem>>, vector<1x1x4xf32>,
    %115 = vector.extract_strided_slice %104 {offsets = [0, 10, 0], sizes = [1, 6, 4], strides = [1, 1, 1]} : vector<1x16x4xf32> to vector<1x6x4xf32>
    %cst_74 = arith.constant dense<0xFF800000> : vector<1x4xf32>
    %116 = vector.multi_reduction <maximumf>, %115, %cst_74 [1] : vector<1x6x4xf32> to vector<1x4xf32>
    %c0_75 = arith.constant 0 : index
    %c7 = arith.constant 7 : index
    %c0_76 = arith.constant 0 : index
    %117 = vector.load %arg3[%c0_75, %c7, %c0_76] : memref<1x30x4xf32, #tpu.memory_space<vmem>>, vector<1x1x4xf32>
    %118 = vector.shape_cast %117 : vector<1x1x4xf32> to vector<1x4xf32>
    %119 = vector.shape_cast %116 : vector<1x4xf32> to vector<1x1x4xf32>
    tpu.vector_store %arg3[%c0_75, %c7, %c0_76], %119 {strides = array<i32>} : memref<1x30x4xf32, #tpu.memory_space<vmem>>, vector<1x1x4xf32>,
    %c0_77 = arith.constant 0 : index
    %c5_78 = arith.constant 5 : index
    %c0_79 = arith.constant 0 : index
    %c0_80 = arith.constant 0 : index
    %120 = vector.load %arg2[%c0_77, %c5_78, %c0_79, %c0_80] : memref<1x16x16x4xf32, #tpu.memory_space<vmem>>, vector<1x6x16x4xf32>
    %cst_81 = arith.constant dense<0xFF800000> : vector<1x16x4xf32>
    %121 = vector.multi_reduction <maximumf>, %120, %cst_81 [1] : vector<1x6x16x4xf32> to vector<1x16x4xf32>
    %122 = vector.extract_strided_slice %121 {offsets = [0, 0, 0], sizes = [1, 6, 4], strides = [1, 1, 1]} : vector<1x16x4xf32> to vector<1x6x4xf32>
    %cst_82 = arith.constant dense<0xFF800000> : vector<1x4xf32>
    %123 = vector.multi_reduction <maximumf>, %122, %cst_82 [1] : vector<1x6x4xf32> to vector<1x4xf32>
    %c0_83 = arith.constant 0 : index
    %c8_84 = arith.constant 8 : index
    %c0_85 = arith.constant 0 : index
    %124 = vector.load %arg3[%c0_83, %c8_84, %c0_85] : memref<1x30x4xf32, #tpu.memory_space<vmem>>, vector<1x1x4xf32>
    %125 = vector.shape_cast %124 : vector<1x1x4xf32> to vector<1x4xf32>
    %126 = vector.shape_cast %123 : vector<1x4xf32> to vector<1x1x4xf32>
    tpu.vector_store %arg3[%c0_83, %c8_84, %c0_85], %126 {strides = array<i32>} : memref<1x30x4xf32, #tpu.memory_space<vmem>>, vector<1x1x4xf32>,
    %127 = vector.extract_strided_slice %121 {offsets = [0, 5, 0], sizes = [1, 6, 4], strides = [1, 1, 1]} : vector<1x16x4xf32> to vector<1x6x4xf32>
    %cst_86 = arith.constant dense<0xFF800000> : vector<1x4xf32>
    %128 = vector.multi_reduction <maximumf>, %127, %cst_86 [1] : vector<1x6x4xf32> to vector<1x4xf32>
    %c0_87 = arith.constant 0 : index
    %c9 = arith.constant 9 : index
    %c0_88 = arith.constant 0 : index
    %129 = vector.load %arg3[%c0_87, %c9, %c0_88] : memref<1x30x4xf32, #tpu.memory_space<vmem>>, vector<1x1x4xf32>
    %130 = vector.shape_cast %129 : vector<1x1x4xf32> to vector<1x4xf32>
    %131 = vector.shape_cast %128 : vector<1x4xf32> to vector<1x1x4xf32>
    tpu.vector_store %arg3[%c0_87, %c9, %c0_88], %131 {strides = array<i32>} : memref<1x30x4xf32, #tpu.memory_space<vmem>>, vector<1x1x4xf32>,
    %132 = vector.extract_strided_slice %121 {offsets = [0, 10, 0], sizes = [1, 6, 4], strides = [1, 1, 1]} : vector<1x16x4xf32> to vector<1x6x4xf32>
    %cst_89 = arith.constant dense<0xFF800000> : vector<1x4xf32>
    %133 = vector.multi_reduction <maximumf>, %132, %cst_89 [1] : vector<1x6x4xf32> to vector<1x4xf32>
    %c0_90 = arith.constant 0 : index
    %c10 = arith.constant 10 : index
    %c0_91 = arith.constant 0 : index
    %134 = vector.load %arg3[%c0_90, %c10, %c0_91] : memref<1x30x4xf32, #tpu.memory_space<vmem>>, vector<1x1x4xf32>
    %135 = vector.shape_cast %134 : vector<1x1x4xf32> to vector<1x4xf32>
    %136 = vector.shape_cast %133 : vector<1x4xf32> to vector<1x1x4xf32>
    tpu.vector_store %arg3[%c0_90, %c10, %c0_91], %136 {strides = array<i32>} : memref<1x30x4xf32, #tpu.memory_space<vmem>>, vector<1x1x4xf32>,
    %c0_92 = arith.constant 0 : index
    %c10_93 = arith.constant 10 : index
    %c0_94 = arith.constant 0 : index
    %c0_95 = arith.constant 0 : index
    %137 = vector.load %arg2[%c0_92, %c10_93, %c0_94, %c0_95] : memref<1x16x16x4xf32, #tpu.memory_space<vmem>>, vector<1x6x16x4xf32>
    %cst_96 = arith.constant dense<0xFF800000> : vector<1x16x4xf32>
    %138 = vector.multi_reduction <maximumf>, %137, %cst_96 [1] : vector<1x6x16x4xf32> to vector<1x16x4xf32>
    %139 = vector.extract_strided_slice %138 {offsets = [0, 0, 0], sizes = [1, 6, 4], strides = [1, 1, 1]} : vector<1x16x4xf32> to vector<1x6x4xf32>
    %cst_97 = arith.constant dense<0xFF800000> : vector<1x4xf32>
    %140 = vector.multi_reduction <maximumf>, %139, %cst_97 [1] : vector<1x6x4xf32> to vector<1x4xf32>
    %c0_98 = arith.constant 0 : index
    %c11 = arith.constant 11 : index
    %c0_99 = arith.constant 0 : index
    %141 = vector.load %arg3[%c0_98, %c11, %c0_99] : memref<1x30x4xf32, #tpu.memory_space<vmem>>, vector<1x1x4xf32>
    %142 = vector.shape_cast %141 : vector<1x1x4xf32> to vector<1x4xf32>
    %143 = vector.shape_cast %140 : vector<1x4xf32> to vector<1x1x4xf32>
    tpu.vector_store %arg3[%c0_98, %c11, %c0_99], %143 {strides = array<i32>} : memref<1x30x4xf32, #tpu.memory_space<vmem>>, vector<1x1x4xf32>,
    %144 = vector.extract_strided_slice %138 {offsets = [0, 5, 0], sizes = [1, 6, 4], strides = [1, 1, 1]} : vector<1x16x4xf32> to vector<1x6x4xf32>
    %cst_100 = arith.constant dense<0xFF800000> : vector<1x4xf32>
    %145 = vector.multi_reduction <maximumf>, %144, %cst_100 [1] : vector<1x6x4xf32> to vector<1x4xf32>
    %c0_101 = arith.constant 0 : index
    %c12_102 = arith.constant 12 : index
    %c0_103 = arith.constant 0 : index
    %146 = vector.load %arg3[%c0_101, %c12_102, %c0_103] : memref<1x30x4xf32, #tpu.memory_space<vmem>>, vector<1x1x4xf32>
    %147 = vector.shape_cast %146 : vector<1x1x4xf32> to vector<1x4xf32>
    %148 = vector.shape_cast %145 : vector<1x4xf32> to vector<1x1x4xf32>
    tpu.vector_store %arg3[%c0_101, %c12_102, %c0_103], %148 {strides = array<i32>} : memref<1x30x4xf32, #tpu.memory_space<vmem>>, vector<1x1x4xf32>,
    %149 = vector.extract_strided_slice %138 {offsets = [0, 10, 0], sizes = [1, 6, 4], strides = [1, 1, 1]} : vector<1x16x4xf32> to vector<1x6x4xf32>
    %cst_104 = arith.constant dense<0xFF800000> : vector<1x4xf32>
    %150 = vector.multi_reduction <maximumf>, %149, %cst_104 [1] : vector<1x6x4xf32> to vector<1x4xf32>
    %c0_105 = arith.constant 0 : index
    %c13 = arith.constant 13 : index
    %c0_106 = arith.constant 0 : index
    %151 = vector.load %arg3[%c0_105, %c13, %c0_106] : memref<1x30x4xf32, #tpu.memory_space<vmem>>, vector<1x1x4xf32>
    %152 = vector.shape_cast %151 : vector<1x1x4xf32> to vector<1x4xf32>
    %153 = vector.shape_cast %150 : vector<1x4xf32> to vector<1x1x4xf32>
    tpu.vector_store %arg3[%c0_105, %c13, %c0_106], %153 {strides = array<i32>} : memref<1x30x4xf32, #tpu.memory_space<vmem>>, vector<1x1x4xf32>,
    %c0_107 = arith.constant 0 : index
    %c0_108 = arith.constant 0 : index
    %c0_109 = arith.constant 0 : index
    %c0_110 = arith.constant 0 : index
    %154 = vector.load %arg2[%c0_107, %c0_108, %c0_109, %c0_110] : memref<1x16x16x4xf32, #tpu.memory_space<vmem>>, vector<1x8x16x4xf32>
    %cst_111 = arith.constant dense<0xFF800000> : vector<1x16x4xf32>
    %155 = vector.multi_reduction <maximumf>, %154, %cst_111 [1] : vector<1x8x16x4xf32> to vector<1x16x4xf32>
    %156 = vector.extract_strided_slice %155 {offsets = [0, 0, 0], sizes = [1, 8, 4], strides = [1, 1, 1]} : vector<1x16x4xf32> to vector<1x8x4xf32>
    %cst_112 = arith.constant dense<0xFF800000> : vector<1x4xf32>
    %157 = vector.multi_reduction <maximumf>, %156, %cst_112 [1] : vector<1x8x4xf32> to vector<1x4xf32>
    %c0_113 = arith.constant 0 : index
    %c1 = arith.constant 1 : index
    %c0_114 = arith.constant 0 : index
    %158 = vector.load %arg3[%c0_113, %c1, %c0_114] : memref<1x30x4xf32, #tpu.memory_space<vmem>>, vector<1x1x4xf32>
    %159 = vector.shape_cast %158 : vector<1x1x4xf32> to vector<1x4xf32>
    %160 = vector.shape_cast %157 : vector<1x4xf32> to vector<1x1x4xf32>
    tpu.vector_store %arg3[%c0_113, %c1, %c0_114], %160 {strides = array<i32>} : memref<1x30x4xf32, #tpu.memory_space<vmem>>, vector<1x1x4xf32>,
    %161 = vector.extract_strided_slice %155 {offsets = [0, 8, 0], sizes = [1, 8, 4], strides = [1, 1, 1]} : vector<1x16x4xf32> to vector<1x8x4xf32>
    %cst_115 = arith.constant dense<0xFF800000> : vector<1x4xf32>
    %162 = vector.multi_reduction <maximumf>, %161, %cst_115 [1] : vector<1x8x4xf32> to vector<1x4xf32>
    %c0_116 = arith.constant 0 : index
    %c2 = arith.constant 2 : index
    %c0_117 = arith.constant 0 : index
    %163 = vector.load %arg3[%c0_116, %c2, %c0_117] : memref<1x30x4xf32, #tpu.memory_space<vmem>>, vector<1x1x4xf32>
    %164 = vector.shape_cast %163 : vector<1x1x4xf32> to vector<1x4xf32>
    %165 = vector.shape_cast %162 : vector<1x4xf32> to vector<1x1x4xf32>
    tpu.vector_store %arg3[%c0_116, %c2, %c0_117], %165 {strides = array<i32>} : memref<1x30x4xf32, #tpu.memory_space<vmem>>, vector<1x1x4xf32>,
    %c0_118 = arith.constant 0 : index
    %c8_119 = arith.constant 8 : index
    %c0_120 = arith.constant 0 : index
    %c0_121 = arith.constant 0 : index
    %166 = vector.load %arg2[%c0_118, %c8_119, %c0_120, %c0_121] : memref<1x16x16x4xf32, #tpu.memory_space<vmem>>, vector<1x8x16x4xf32>
    %cst_122 = arith.constant dense<0xFF800000> : vector<1x16x4xf32>
    %167 = vector.multi_reduction <maximumf>, %166, %cst_122 [1] : vector<1x8x16x4xf32> to vector<1x16x4xf32>
    %168 = vector.extract_strided_slice %167 {offsets = [0, 0, 0], sizes = [1, 8, 4], strides = [1, 1, 1]} : vector<1x16x4xf32> to vector<1x8x4xf32>
    %cst_123 = arith.constant dense<0xFF800000> : vector<1x4xf32>
    %169 = vector.multi_reduction <maximumf>, %168, %cst_123 [1] : vector<1x8x4xf32> to vector<1x4xf32>
    %c0_124 = arith.constant 0 : index
    %c3 = arith.constant 3 : index
    %c0_125 = arith.constant 0 : index
    %170 = vector.load %arg3[%c0_124, %c3, %c0_125] : memref<1x30x4xf32, #tpu.memory_space<vmem>>, vector<1x1x4xf32>
    %171 = vector.shape_cast %170 : vector<1x1x4xf32> to vector<1x4xf32>
    %172 = vector.shape_cast %169 : vector<1x4xf32> to vector<1x1x4xf32>
    tpu.vector_store %arg3[%c0_124, %c3, %c0_125], %172 {strides = array<i32>} : memref<1x30x4xf32, #tpu.memory_space<vmem>>, vector<1x1x4xf32>,
    %173 = vector.extract_strided_slice %167 {offsets = [0, 8, 0], sizes = [1, 8, 4], strides = [1, 1, 1]} : vector<1x16x4xf32> to vector<1x8x4xf32>
    %cst_126 = arith.constant dense<0xFF800000> : vector<1x4xf32>
    %174 = vector.multi_reduction <maximumf>, %173, %cst_126 [1] : vector<1x8x4xf32> to vector<1x4xf32>
    %c0_127 = arith.constant 0 : index
    %c4_128 = arith.constant 4 : index
    %c0_129 = arith.constant 0 : index
    %175 = vector.load %arg3[%c0_127, %c4_128, %c0_129] : memref<1x30x4xf32, #tpu.memory_space<vmem>>, vector<1x1x4xf32>
    %176 = vector.shape_cast %175 : vector<1x1x4xf32> to vector<1x4xf32>
    %177 = vector.shape_cast %174 : vector<1x4xf32> to vector<1x1x4xf32>
    tpu.vector_store %arg3[%c0_127, %c4_128, %c0_129], %177 {strides = array<i32>} : memref<1x30x4xf32, #tpu.memory_space<vmem>>, vector<1x1x4xf32>,
    %c0_130 = arith.constant 0 : index
    %c0_131 = arith.constant 0 : index
    %c0_132 = arith.constant 0 : index
    %178 = vector.load %arg3[%c0_130, %c0_131, %c0_132] : memref<1x30x4xf32, #tpu.memory_space<vmem>>, vector<1x1x4xf32>
    %179 = vector.shape_cast %178 : vector<1x1x4xf32> to vector<1x4xf32>
    %180 = vector.shape_cast %102 : vector<1x4xf32> to vector<1x1x4xf32>
    tpu.vector_store %arg3[%c0_130, %c0_131, %c0_132], %180 {strides = array<i32>} : memref<1x30x4xf32, #tpu.memory_space<vmem>>, vector<1x1x4xf32>,
    return
  }
  func.func @transform_0(%arg0: i32, %arg1: i32) -> (i32, i32, i32, i32) {
    %c0_i32 = arith.constant 0 : i32
    %c0_i32_0 = arith.constant 0 : i32
    %c0_i32_1 = arith.constant 0 : i32
    return %arg0, %c0_i32, %c0_i32_0, %arg1 : i32, i32, i32, i32
  }
  func.func @transform_1(%arg0: i32, %arg1: i32) -> (i32, i32, i32) {
    %c0_i32 = arith.constant 0 : i32
    %c0_i32_0 = arith.constant 0 : i32
    return %arg0, %c0_i32, %arg1 : i32, i32, i32
  }
}

</mosaic_0001>

<llo_original>
// kernel: tpu_custom_call.1
$region0: #{tpu_custom_call.1}
  #allocation0 [shape = 'u32[]', space=smem, size = 0x4, offset = 0x4, fixed_abs, tag = 'smem constant byte address 0x4 - core index']
  #allocation1 [shape = 'u32[144,128]{1,0:T(1,128)}', space=vmem, size = 0x12000, scoped, tag = 'internal scratch']
  %s0 = inlined_call_operand.vmem [shape: f32[2,16,16,4], index: 0, kind: input, shape index: {}]
  %s1 = inlined_call_operand.vmem [shape: f32[2,30,4], index: 1, kind: output, shape index: {}]
  %s2 = sld [smem:[#allocation0]]
  $region37: #{tpu_custom_call.1} parent=0
    _
  %s4 = ssub.s32 1, %s2
  %s5 = scalar_select 0, %s4, %s2
  loop: start=0, step=1, limit=4
  $region2: #{tpu_custom_call.1} parent=0 // loop_pre_header
    _
  $region3: #{tpu_custom_call.1} parent=0 // loop_header
    %s7 = sphi 0, %s11
    %p8 = scmp.ge.s32.totalorder %s7, 4
    %s14 = sphi 0, %s26
    %s15 = sphi 0, %s22
    %s16 = sphi 0, %s14
    %s17 = sphi 0, %s15
    %s18 = sphi 0, %s16
    %s19 = sphi 0, %s17
    %s31 = sphi 0, %s33
    %s34 = sphi 0, %s31
    %s35 = sphi 0, %s34
    %s51 = sphi 0, %s35
    %s59 = sphi 0, %s61
    %s62 = sphi 0, %s59
    %s63 = sphi 0, %s62
    %s79 = sphi 0, %s63
  $region4: #{tpu_custom_call.1} parent=0 // loop_header_branch
    %10 = sbr.rel (%p8) target = $region8
  $region5: #{tpu_custom_call.1} parent=0 // loop_body
    %s12 = ssub.s32 %s7, 1
    %s13 = ssub.s32 %s7, 2
    %s20 = sadd.s32 1, %s15
    %p21 = scmp.ge.s32.totalorder %s20, 1
    %s22 = scalar_select %p21, 0, %s20
    %s23 = sadd.s32 1, %s14
    %s24 = scalar_select %p21, %s23, %s14
    %p25 = scmp.ge.s32.totalorder %s24, 2
    %s26 = scalar_select %p25, 0, %s24
    %s27 = ssub.s32 %s14, %s26
    %s28 = ssub.s32 %s15, %s22
    %s29 = sor.u32 %s27, %s28
    %p30 = scmp.eq.s32.totalorder %s29, 0
    %s32 = sadd.s32 %s31, 1
    %s33 = scalar_select %p30, %s31, %s32
    %p36 = pneg %p30
    %p37 = scmp.eq.s32.totalorder %s7, 1
    %p38 = por %p36, %p37
    %p39 = scmp.ne.s32.totalorder %s31, %s34
    %p40 = scmp.eq.s32.totalorder %s7, 0
    %p41 = por %p39, %p40
    %p42 = scmp.ne.s32.totalorder %s31, %s34
    %p43 = scmp.eq.s32.totalorder %s12, 1
    %p44 = por %p42, %p43
    %p45 = scmp.ne.s32.totalorder %s34, %s35
    %p46 = scmp.eq.s32.totalorder %s12, 0
    %p47 = por %p45, %p46
    %p48 = scmp.ne.s32.totalorder %s34, %s35
    %p49 = scmp.eq.s32.totalorder %s13, 1
    %p50 = por %p48, %p49
    %p52 = scmp.ne.s32.totalorder %s35, %s51
    %p53 = scmp.eq.s32.totalorder %s13, 0
    %p54 = por %p52, %p53
    %s55 = ssub.s32 %s14, %s26
    %s56 = ssub.s32 %s15, %s22
    %s57 = sor.u32 %s55, %s56
    %p58 = scmp.eq.s32.totalorder %s57, 0
    %s60 = sadd.s32 %s59, 1
    %s61 = scalar_select %p58, %s59, %s60
    %p64 = pneg %p58
    %p65 = scmp.eq.s32.totalorder %s7, 1
    %p66 = por %p64, %p65
    %p67 = scmp.ne.s32.totalorder %s59, %s62
    %p68 = scmp.eq.s32.totalorder %s7, 0
    %p69 = por %p67, %p68
    %p70 = scmp.ne.s32.totalorder %s59, %s62
    %p71 = scmp.eq.s32.totalorder %s12, 1
    %p72 = por %p70, %p71
    %p73 = scmp.ne.s32.totalorder %s62, %s63
    %p74 = scmp.eq.s32.totalorder %s12, 0
    %p75 = por %p73, %p74
    %p76 = scmp.ne.s32.totalorder %s62, %s63
    %p77 = scmp.eq.s32.totalorder %s13, 1
    %p78 = por %p76, %p77
    %p80 = scmp.ne.s32.totalorder %s63, %s79
    %p81 = scmp.eq.s32.totalorder %s13, 0
    %p82 = por %p80, %p81
    %p83 = scmp.le.s32.totalorder 1, %s7
    %p84 = scmp.lt.s32.totalorder %s7, 3
    %p85 = pnand %p83, %p84
    %p86 = pneg %p85
    // Predicated region
    $region9: #{tpu_custom_call.1} parent=5 // pred_check
      _
    $region10: #{tpu_custom_call.1} parent=5 // pred_check_branch
      %88 = sbr.rel (%p85) target = $region12
    $region11: #{tpu_custom_call.1} parent=5 // pred_region
      %s89 = ssub.s32 %s7, 1
    $region12: #{tpu_custom_call.1} parent=5 // pred_fallthru
      _
    %p90 = scmp.lt.s32.totalorder %s7, 2
    // Predicated region
    $region13: #{tpu_custom_call.1} parent=5 // pred_check
      %p91 = pneg %p90
    $region14: #{tpu_custom_call.1} parent=5 // pred_check_branch
      %93 = sbr.rel (%p91) target = $region16
    $region15: #{tpu_custom_call.1} parent=5 // pred_region
      // Predicated region
      $region17: #{tpu_custom_call.1} parent=15 // pred_check
        %p94 = pneg %p41
      $region18: #{tpu_custom_call.1} parent=15 // pred_check_branch
        %96 = sbr.rel (%p94) target = $region20
      $region19: #{tpu_custom_call.1} parent=15 // pred_region
        %p97 = scmp.lt.s32.totalorder %s14, 1
        %s98 = scalar_select %p97, %s14, 1
        %p99 = scmp.lt.s32.totalorder %s15, 0
        %s100 = scalar_select %p99, %s15, 0
        %s101 = smul.addr %s98, 32
        %s102 = sadd.s32 %s100, %s101
        %s103 = smul.addr %s102, 8
        %s104 = scalar_lea.vmem %s0, %s103
      $region20: #{tpu_custom_call.1} parent=15 // pred_fallthru
        _
    $region16: #{tpu_custom_call.1} parent=5 // pred_fallthru
      _
    %p105 = scmp.le.s32.totalorder 1, %s7
    %p106 = scmp.lt.s32.totalorder %s7, 3
    %p107 = pnand %p105, %p106
    %p108 = pneg %p107
    // Predicated region
    $region21: #{tpu_custom_call.1} parent=5 // pred_check
      _
    $region22: #{tpu_custom_call.1} parent=5 // pred_check_branch
      %110 = sbr.rel (%p107) target = $region24
    $region23: #{tpu_custom_call.1} parent=5 // pred_region
      %s111 = ssub.s32 %s7, 1
      %p112 = scmp.lt.s32.totalorder %s16, 1
      %s113 = scalar_select %p112, %s16, 1
      %p114 = scmp.lt.s32.totalorder %s17, 0
      %s115 = scalar_select %p114, %s17, 0
      %s116 = smul.addr %s113, 32
      %s117 = sadd.s32 %s115, %s116
      %s118 = smul.addr %s117, 8
      %s119 = scalar_lea.vmem %s0, %s118
      %p120 = pneg %p47
      %p121 = pneg %p44
      %p122 = pneg %p75
      %p123 = pneg %p72
      %p124 = scmp.lt.s32.totalorder %s16, 1
      %s125 = scalar_select %p124, %s16, 1
      %p126 = scmp.lt.s32.totalorder %s17, 0
      %s127 = scalar_select %p126, %s17, 0
      %s128 = smul.addr %s125, 4
      %s129 = sadd.s32 %s127, %s128
      %s130 = smul.addr %s129, 8
      %s131 = scalar_lea.vmem %s1, %s130
      %p132 = scmp.lt.s32.totalorder %s16, 1
      %s133 = scalar_select %p132, %s16, 1
      %p134 = scmp.lt.s32.totalorder %s17, 0
      %s135 = scalar_select %p134, %s17, 0
      %s136 = smul.addr %s133, 32
      %s137 = sadd.s32 %s135, %s136
      %s138 = smul.addr %s137, 8
      %s139 = scalar_lea.vmem %s0, %s138
      %p140 = scmp.lt.s32.totalorder %s16, 1
      %s141 = scalar_select %p140, %s16, 1
      %p142 = scmp.lt.s32.totalorder %s17, 0
      %s143 = scalar_select %p142, %s17, 0
      %s144 = smul.addr %s141, 4
      %s145 = sadd.s32 %s143, %s144
      %s146 = smul.addr %s145, 8
      %s147 = scalar_lea.vmem %s1, %s146
      %v148 = vld [vmem:[%s139] sm:$0xff]
      %v149 = vld [vmem:[%s139 + $0x8] sm:$0xff]
      %v150 = vld [vmem:[%s139 + $0x10] sm:$0xff]
      %v151 = vld [vmem:[%s139 + $0x18] sm:$0xff]
      %v152 = vld [vmem:[%s139 + $0x20] sm:$0xff]
      %v153 = vld [vmem:[%s139 + $0x28] sm:$0xff]
      %v154 = vld [vmem:[%s139 + $0x30] sm:$0xff]
      %v155 = vld [vmem:[%s139 + $0x38] sm:$0xff]
      %vm156 = vcmask 31744
      %v157 = vsel %vm156, %v148, -inf
      %v158 = vsel %vm156, %v150, -inf
      %v159 = vsel %vm156, %v152, -inf
      %v160 = vmax.f32 %v157, %v159
      %v161 = vsel %vm156, %v154, -inf
      %v162 = vmax.f32 %v158, %v161
      %v163 = vmax.f32 %v160, %v162
      %v164 = vsel %vm156, %v149, -inf
      %v165 = vsel %vm156, %v151, -inf
      %v166 = vsel %vm156, %v153, -inf
      %v167 = vmax.f32 %v164, %v166
      %v168 = vsel %vm156, %v155, -inf
      %v169 = vmax.f32 %v165, %v168
      %v170 = vmax.f32 %v167, %v169
      %vm171 = vcmask 27648
      %v172 = vsel %vm171, %v163, -inf
      %v173 = vrot.slane %v172, 4
      %v174 = vmax.f32 %v172, %v173
      %v175 = vrot.slane %v174, 2
      %v176 = vmax.f32 %v174, %v175
      %v177 = vrot.slane %v176, 1
      %v178 = vmax.f32 %v176, %v177
      %vm179 = vcmask 24576
      %180 = vst.msk [vmem:[%s147 + $0xe] sm:$0x1] %vm179, %v178
      %vm181 = vcmask 31748
      %v182 = vsel %vm181, %v163, -inf
      %v183 = vrot.slane %v182, 4
      %v184 = vmax.f32 %v182, %v183
      %v185 = vrot.slane %v184, 2
      %v186 = vmax.f32 %v184, %v185
      %v187 = vrot.slane %v186, 1
      %v188 = vmax.f32 %v186, %v187
      %189 = vst.msk [vmem:[%s147 + $0xf] sm:$0x1] %vm179, %v188
      %v190 = vmax.f32 %v178, %v188
      %v191 = vsel %vm171, %v170, -inf
      %v192 = vrot.slane %v191, 4
      %v193 = vmax.f32 %v191, %v192
      %v194 = vrot.slane %v193, 2
      %v195 = vmax.f32 %v193, %v194
      %v196 = vrot.slane %v195, 1
      %v197 = vmax.f32 %v195, %v196
      %198 = vst.msk [vmem:[%s147 + $0x10] sm:$0x1] %vm179, %v197
      %v199 = vmax.f32 %v190, %v197
      %v200 = vsel %vm181, %v170, -inf
      %v201 = vrot.slane %v200, 4
      %v202 = vmax.f32 %v200, %v201
      %v203 = vrot.slane %v202, 2
      %v204 = vmax.f32 %v202, %v203
      %v205 = vrot.slane %v204, 1
      %v206 = vmax.f32 %v204, %v205
      %207 = vst.msk [vmem:[%s147 + $0x11] sm:$0x1] %vm179, %v206
      %v208 = vmax.f32 %v199, %v206
      %s209 = scalar_lea.vmem %s139, 64
      %v210 = vld [vmem:[%s209] sm:$0xff]
      %v211 = vld [vmem:[%s209 + $0x8] sm:$0xff]
      %v212 = vld [vmem:[%s209 + $0x10] sm:$0xff]
      %v213 = vld [vmem:[%s209 + $0x18] sm:$0xff]
      %v214 = vld [vmem:[%s209 + $0x20] sm:$0xff]
      %v215 = vld [vmem:[%s209 + $0x28] sm:$0xff]
      %v216 = vld [vmem:[%s209 + $0x30] sm:$0xff]
      %v217 = vld [vmem:[%s209 + $0x38] sm:$0xff]
      %v218 = vsel %vm156, %v210, -inf
      %v219 = vsel %vm156, %v212, -inf
      %v220 = vsel %vm156, %v214, -inf
      %v221 = vmax.f32 %v218, %v220
      %v222 = vsel %vm156, %v216, -inf
      %v223 = vmax.f32 %v219, %v222
      %v224 = vmax.f32 %v221, %v223
      %v225 = vsel %vm156, %v211, -inf
      %v226 = vsel %vm156, %v213, -inf
      %v227 = vsel %vm156, %v215, -inf
      %v228 = vmax.f32 %v225, %v227
      %v229 = vsel %vm156, %v217, -inf
      %v230 = vmax.f32 %v226, %v229
      %v231 = vmax.f32 %v228, %v230
      %v232 = vsel %vm171, %v224, -inf
      %v233 = vrot.slane %v232, 4
      %v234 = vmax.f32 %v232, %v233
      %v235 = vrot.slane %v234, 2
      %v236 = vmax.f32 %v234, %v235
      %v237 = vrot.slane %v236, 1
      %v238 = vmax.f32 %v236, %v237
      %239 = vst.msk [vmem:[%s147 + $0x12] sm:$0x1] %vm179, %v238
      %v240 = vmax.f32 %v208, %v238
      %v241 = vsel %vm181, %v224, -inf
      %v242 = vrot.slane %v241, 4
      %v243 = vmax.f32 %v241, %v242
      %v244 = vrot.slane %v243, 2
      %v245 = vmax.f32 %v243, %v244
      %v246 = vrot.slane %v245, 1
      %v247 = vmax.f32 %v245, %v246
      %248 = vst.msk [vmem:[%s147 + $0x13] sm:$0x1] %vm179, %v247
      %v249 = vmax.f32 %v240, %v247
      %v250 = vsel %vm171, %v231, -inf
      %v251 = vrot.slane %v250, 4
      %v252 = vmax.f32 %v250, %v251
      %v253 = vrot.slane %v252, 2
      %v254 = vmax.f32 %v252, %v253
      %v255 = vrot.slane %v254, 1
      %v256 = vmax.f32 %v254, %v255
      %257 = vst.msk [vmem:[%s147 + $0x14] sm:$0x1] %vm179, %v256
      %v258 = vmax.f32 %v249, %v256
      %v259 = vsel %vm181, %v231, -inf
      %v260 = vrot.slane %v259, 4
      %v261 = vmax.f32 %v259, %v260
      %v262 = vrot.slane %v261, 2
      %v263 = vmax.f32 %v261, %v262
      %v264 = vrot.slane %v263, 1
      %v265 = vmax.f32 %v263, %v264
      %266 = vst.msk [vmem:[%s147 + $0x15] sm:$0x1] %vm179, %v265
      %v267 = vmax.f32 %v258, %v265
      %s268 = scalar_lea.vmem %s139, 128
      %v269 = vld [vmem:[%s268] sm:$0xff]
      %v270 = vld [vmem:[%s268 + $0x8] sm:$0xff]
      %v271 = vld [vmem:[%s268 + $0x10] sm:$0xff]
      %v272 = vld [vmem:[%s268 + $0x18] sm:$0xff]
      %v273 = vld [vmem:[%s268 + $0x20] sm:$0xff]
      %v274 = vld [vmem:[%s268 + $0x28] sm:$0xff]
      %v275 = vld [vmem:[%s268 + $0x30] sm:$0xff]
      %v276 = vld [vmem:[%s268 + $0x38] sm:$0xff]
      %v277 = vsel %vm156, %v269, -inf
      %v278 = vsel %vm156, %v271, -inf
      %v279 = vsel %vm156, %v273, -inf
      %v280 = vmax.f32 %v277, %v279
      %v281 = vsel %vm156, %v275, -inf
      %v282 = vmax.f32 %v278, %v281
      %v283 = vmax.f32 %v280, %v282
      %v284 = vsel %vm156, %v270, -inf
      %v285 = vsel %vm156, %v272, -inf
      %v286 = vsel %vm156, %v274, -inf
      %v287 = vmax.f32 %v284, %v286
      %v288 = vsel %vm156, %v276, -inf
      %v289 = vmax.f32 %v285, %v288
      %v290 = vmax.f32 %v287, %v289
      %v291 = vsel %vm171, %v283, -inf
      %v292 = vrot.slane %v291, 4
      %v293 = vmax.f32 %v291, %v292
      %v294 = vrot.slane %v293, 2
      %v295 = vmax.f32 %v293, %v294
      %v296 = vrot.slane %v295, 1
      %v297 = vmax.f32 %v295, %v296
      %298 = vst.msk [vmem:[%s147 + $0x16] sm:$0x1] %vm179, %v297
      %v299 = vmax.f32 %v267, %v297
      %v300 = vsel %vm181, %v283, -inf
      %v301 = vrot.slane %v300, 4
      %v302 = vmax.f32 %v300, %v301
      %v303 = vrot.slane %v302, 2
      %v304 = vmax.f32 %v302, %v303
      %v305 = vrot.slane %v304, 1
      %v306 = vmax.f32 %v304, %v305
      %307 = vst.msk [vmem:[%s147 + $0x17] sm:$0x1] %vm179, %v306
      %v308 = vmax.f32 %v299, %v306
      %v309 = vsel %vm171, %v290, -inf
      %v310 = vrot.slane %v309, 4
      %v311 = vmax.f32 %v309, %v310
      %v312 = vrot.slane %v311, 2
      %v313 = vmax.f32 %v311, %v312
      %v314 = vrot.slane %v313, 1
      %v315 = vmax.f32 %v313, %v314
      %316 = vst.msk [vmem:[%s147 + $0x18] sm:$0x1] %vm179, %v315
      %v317 = vmax.f32 %v308, %v315
      %v318 = vsel %vm181, %v290, -inf
      %v319 = vrot.slane %v318, 4
      %v320 = vmax.f32 %v318, %v319
      %v321 = vrot.slane %v320, 2
      %v322 = vmax.f32 %v320, %v321
      %v323 = vrot.slane %v322, 1
      %v324 = vmax.f32 %v322, %v323
      %325 = vst.msk [vmem:[%s147 + $0x19] sm:$0x1] %vm179, %v324
      %v326 = vmax.f32 %v317, %v324
      %s327 = scalar_lea.vmem %s139, 192
      %v328 = vld [vmem:[%s327] sm:$0xff]
      %v329 = vld [vmem:[%s327 + $0x8] sm:$0xff]
      %v330 = vld [vmem:[%s327 + $0x10] sm:$0xff]
      %v331 = vld [vmem:[%s327 + $0x18] sm:$0xff]
      %v332 = vld [vmem:[%s327 + $0x20] sm:$0xff]
      %v333 = vld [vmem:[%s327 + $0x28] sm:$0xff]
      %v334 = vld [vmem:[%s327 + $0x30] sm:$0xff]
      %v335 = vld [vmem:[%s327 + $0x38] sm:$0xff]
      %v336 = vsel %vm156, %v328, -inf
      %v337 = vsel %vm156, %v330, -inf
      %v338 = vsel %vm156, %v332, -inf
      %v339 = vmax.f32 %v336, %v338
      %v340 = vsel %vm156, %v334, -inf
      %v341 = vmax.f32 %v337, %v340
      %v342 = vmax.f32 %v339, %v341
      %v343 = vsel %vm156, %v329, -inf
      %v344 = vsel %vm156, %v331, -inf
      %v345 = vsel %vm156, %v333, -inf
      %v346 = vmax.f32 %v343, %v345
      %v347 = vsel %vm156, %v335, -inf
      %v348 = vmax.f32 %v344, %v347
      %v349 = vmax.f32 %v346, %v348
      %v350 = vsel %vm171, %v342, -inf
      %v351 = vrot.slane %v350, 4
      %v352 = vmax.f32 %v350, %v351
      %v353 = vrot.slane %v352, 2
      %v354 = vmax.f32 %v352, %v353
      %v355 = vrot.slane %v354, 1
      %v356 = vmax.f32 %v354, %v355
      %357 = vst.msk [vmem:[%s147 + $0x1a] sm:$0x1] %vm179, %v356
      %v358 = vmax.f32 %v326, %v356
      %v359 = vsel %vm181, %v342, -inf
      %v360 = vrot.slane %v359, 4
      %v361 = vmax.f32 %v359, %v360
      %v362 = vrot.slane %v361, 2
      %v363 = vmax.f32 %v361, %v362
      %v364 = vrot.slane %v363, 1
      %v365 = vmax.f32 %v363, %v364
      %366 = vst.msk [vmem:[%s147 + $0x1b] sm:$0x1] %vm179, %v365
      %v367 = vmax.f32 %v358, %v365
      %v368 = vsel %vm171, %v349, -inf
      %v369 = vrot.slane %v368, 4
      %v370 = vmax.f32 %v368, %v369
      %v371 = vrot.slane %v370, 2
      %v372 = vmax.f32 %v370, %v371
      %v373 = vrot.slane %v372, 1
      %v374 = vmax.f32 %v372, %v373
      %375 = vst.msk [vmem:[%s147 + $0x1c] sm:$0x1] %vm179, %v374
      %v376 = vmax.f32 %v367, %v374
      %v377 = vsel %vm181, %v349, -inf
      %v378 = vrot.slane %v377, 4
      %v379 = vmax.f32 %v377, %v378
      %v380 = vrot.slane %v379, 2
      %v381 = vmax.f32 %v379, %v380
      %v382 = vrot.slane %v381, 1
      %v383 = vmax.f32 %v381, %v382
      %384 = vst.msk [vmem:[%s147 + $0x1d] sm:$0x1] %vm179, %v383
      %v385 = vmax.f32 %v376, %v383
      %v386 = vld [vmem:[%s139] sm:$0xff]
      %v387 = vld [vmem:[%s139 + $0x8] sm:$0xff]
      %v388 = vld [vmem:[%s139 + $0x10] sm:$0xff]
      %v389 = vld [vmem:[%s139 + $0x18] sm:$0xff]
      %v390 = vld [vmem:[%s139 + $0x20] sm:$0xff]
      %v391 = vld [vmem:[%s139 + $0x28] sm:$0xff]
      %v392 = vld [vmem:[%s139 + $0x30] sm:$0xff]
      %v393 = vld [vmem:[%s139 + $0x38] sm:$0xff]
      %v394 = vld [vmem:[%s139 + $0x40] sm:$0xff]
      %v395 = vld [vmem:[%s139 + $0x48] sm:$0xff]
      %v396 = vld [vmem:[%s139 + $0x50] sm:$0xff]
      %v397 = vld [vmem:[%s139 + $0x58] sm:$0xff]
      %v398 = vsel %vm156, %v386, -inf
      %v399 = vsel %vm156, %v388, -inf
      %v400 = vsel %vm156, %v390, -inf
      %v401 = vmax.f32 %v398, %v400
      %v402 = vsel %vm156, %v392, -inf
      %v403 = vmax.f32 %v399, %v402
      %v404 = vsel %vm156, %v394, -inf
      %v405 = vmax.f32 %v401, %v404
      %v406 = vsel %vm156, %v396, -inf
      %v407 = vmax.f32 %v403, %v406
      %v408 = vmax.f32 %v405, %v407
      %v409 = vsel %vm156, %v387, -inf
      %v410 = vsel %vm156, %v389, -inf
      %v411 = vsel %vm156, %v391, -inf
      %v412 = vmax.f32 %v409, %v411
      %v413 = vsel %vm156, %v393, -inf
      %v414 = vmax.f32 %v410, %v413
      %v415 = vsel %vm156, %v395, -inf
      %v416 = vmax.f32 %v412, %v415
      %v417 = vsel %vm156, %v397, -inf
      %v418 = vmax.f32 %v414, %v417
      %v419 = vmax.f32 %v416, %v418
      %vm420 = vcmask 29696
      %v421 = vsel %vm420, %v408, -inf
      %v422 = vrot.slane %v421, 4
      %v423 = vmax.f32 %v421, %v422
      %v424 = vrot.slane %v423, 2
      %v425 = vmax.f32 %v423, %v424
      %v426 = vrot.slane %v425, 1
      %v427 = vmax.f32 %v425, %v426
      %428 = vst.msk [vmem:[%s147 + $0x5] sm:$0x1] %vm179, %v427
      %vm429 = vcmask 31749
      %v430 = vsel %vm429, %v408, -inf
      %vm431 = vcmask 26624
      %v432 = vsel %vm431, %v419, -inf
      %v433 = vmax.f32 %v430, %v432
      %v434 = vrot.slane %v433, 4
      %v435 = vmax.f32 %v433, %v434
      %v436 = vrot.slane %v435, 2
      %v437 = vmax.f32 %v435, %v436
      %v438 = vrot.slane %v437, 1
      %v439 = vmax.f32 %v437, %v438
      %440 = vst.msk [vmem:[%s147 + $0x6] sm:$0x1] %vm179, %v439
      %vm441 = vcmask 31746
      %v442 = vsel %vm441, %v419, -inf
      %v443 = vrot.slane %v442, 4
      %v444 = vmax.f32 %v442, %v443
      %v445 = vrot.slane %v444, 2
      %v446 = vmax.f32 %v444, %v445
      %v447 = vrot.slane %v446, 1
      %v448 = vmax.f32 %v446, %v447
      %449 = vst.msk [vmem:[%s147 + $0x7] sm:$0x1] %vm179, %v448
      %s450 = scalar_lea.vmem %s139, 80
      %v451 = vld [vmem:[%s450] sm:$0xff]
      %v452 = vld [vmem:[%s450 + $0x8] sm:$0xff]
      %v453 = vld [vmem:[%s450 + $0x10] sm:$0xff]
      %v454 = vld [vmem:[%s450 + $0x18] sm:$0xff]
      %v455 = vld [vmem:[%s450 + $0x20] sm:$0xff]
      %v456 = vld [vmem:[%s450 + $0x28] sm:$0xff]
      %v457 = vld [vmem:[%s450 + $0x30] sm:$0xff]
      %v458 = vld [vmem:[%s450 + $0x38] sm:$0xff]
      %v459 = vld [vmem:[%s450 + $0x40] sm:$0xff]
      %v460 = vld [vmem:[%s450 + $0x48] sm:$0xff]
      %v461 = vld [vmem:[%s450 + $0x50] sm:$0xff]
      %v462 = vld [vmem:[%s450 + $0x58] sm:$0xff]
      %v463 = vsel %vm156, %v451, -inf
      %v464 = vsel %vm156, %v453, -inf
      %v465 = vsel %vm156, %v455, -inf
      %v466 = vmax.f32 %v463, %v465
      %v467 = vsel %vm156, %v457, -inf
      %v468 = vmax.f32 %v464, %v467
      %v469 = vsel %vm156, %v459, -inf
      %v470 = vmax.f32 %v466, %v469
      %v471 = vsel %vm156, %v461, -inf
      %v472 = vmax.f32 %v468, %v471
      %v473 = vmax.f32 %v470, %v472
      %v474 = vsel %vm156, %v452, -inf
      %v475 = vsel %vm156, %v454, -inf
      %v476 = vsel %vm156, %v456, -inf
      %v477 = vmax.f32 %v474, %v476
      %v478 = vsel %vm156, %v458, -inf
      %v479 = vmax.f32 %v475, %v478
      %v480 = vsel %vm156, %v460, -inf
      %v481 = vmax.f32 %v477, %v480
      %v482 = vsel %vm156, %v462, -inf
      %v483 = vmax.f32 %v479, %v482
      %v484 = vmax.f32 %v481, %v483
      %v485 = vsel %vm420, %v473, -inf
      %v486 = vrot.slane %v485, 4
      %v487 = vmax.f32 %v485, %v486
      %v488 = vrot.slane %v487, 2
      %v489 = vmax.f32 %v487, %v488
      %v490 = vrot.slane %v489, 1
      %v491 = vmax.f32 %v489, %v490
      %492 = vst.msk [vmem:[%s147 + $0x8] sm:$0x1] %vm179, %v491
      %v493 = vsel %vm429, %v473, -inf
      %v494 = vsel %vm431, %v484, -inf
      %v495 = vmax.f32 %v493, %v494
      %v496 = vrot.slane %v495, 4
      %v497 = vmax.f32 %v495, %v496
      %v498 = vrot.slane %v497, 2
      %v499 = vmax.f32 %v497, %v498
      %v500 = vrot.slane %v499, 1
      %v501 = vmax.f32 %v499, %v500
      %502 = vst.msk [vmem:[%s147 + $0x9] sm:$0x1] %vm179, %v501
      %v503 = vsel %vm441, %v484, -inf
      %v504 = vrot.slane %v503, 4
      %v505 = vmax.f32 %v503, %v504
      %v506 = vrot.slane %v505, 2
      %v507 = vmax.f32 %v505, %v506
      %v508 = vrot.slane %v507, 1
      %v509 = vmax.f32 %v507, %v508
      %510 = vst.msk [vmem:[%s147 + $0xa] sm:$0x1] %vm179, %v509
      %s511 = scalar_lea.vmem %s139, 160
      %v512 = vld [vmem:[%s511] sm:$0xff]
      %v513 = vld [vmem:[%s511 + $0x8] sm:$0xff]
      %v514 = vld [vmem:[%s511 + $0x10] sm:$0xff]
      %v515 = vld [vmem:[%s511 + $0x18] sm:$0xff]
      %v516 = vld [vmem:[%s511 + $0x20] sm:$0xff]
      %v517 = vld [vmem:[%s511 + $0x28] sm:$0xff]
      %v518 = vld [vmem:[%s511 + $0x30] sm:$0xff]
      %v519 = vld [vmem:[%s511 + $0x38] sm:$0xff]
      %v520 = vld [vmem:[%s511 + $0x40] sm:$0xff]
      %v521 = vld [vmem:[%s511 + $0x48] sm:$0xff]
      %v522 = vld [vmem:[%s511 + $0x50] sm:$0xff]
      %v523 = vld [vmem:[%s511 + $0x58] sm:$0xff]
      %v524 = vsel %vm156, %v512, -inf
      %v525 = vsel %vm156, %v514, -inf
      %v526 = vsel %vm156, %v516, -inf
      %v527 = vmax.f32 %v524, %v526
      %v528 = vsel %vm156, %v518, -inf
      %v529 = vmax.f32 %v525, %v528
      %v530 = vsel %vm156, %v520, -inf
      %v531 = vmax.f32 %v527, %v530
      %v532 = vsel %vm156, %v522, -inf
      %v533 = vmax.f32 %v529, %v532
      %v534 = vmax.f32 %v531, %v533
      %v535 = vsel %vm156, %v513, -inf
      %v536 = vsel %vm156, %v515, -inf
      %v537 = vsel %vm156, %v517, -inf
      %v538 = vmax.f32 %v535, %v537
      %v539 = vsel %vm156, %v519, -inf
      %v540 = vmax.f32 %v536, %v539
      %v541 = vsel %vm156, %v521, -inf
      %v542 = vmax.f32 %v538, %v541
      %v543 = vsel %vm156, %v523, -inf
      %v544 = vmax.f32 %v540, %v543
      %v545 = vmax.f32 %v542, %v544
      %v546 = vsel %vm420, %v534, -inf
      %v547 = vrot.slane %v546, 4
      %v548 = vmax.f32 %v546, %v547
      %v549 = vrot.slane %v548, 2
      %v550 = vmax.f32 %v548, %v549
      %v551 = vrot.slane %v550, 1
      %v552 = vmax.f32 %v550, %v551
      %553 = vst.msk [vmem:[%s147 + $0xb] sm:$0x1] %vm179, %v552
      %v554 = vsel %vm429, %v534, -inf
      %v555 = vsel %vm431, %v545, -inf
      %v556 = vmax.f32 %v554, %v555
      %v557 = vrot.slane %v556, 4
      %v558 = vmax.f32 %v556, %v557
      %v559 = vrot.slane %v558, 2
      %v560 = vmax.f32 %v558, %v559
      %v561 = vrot.slane %v560, 1
      %v562 = vmax.f32 %v560, %v561
      %563 = vst.msk [vmem:[%s147 + $0xc] sm:$0x1] %vm179, %v562
      %v564 = vsel %vm441, %v545, -inf
      %v565 = vrot.slane %v564, 4
      %v566 = vmax.f32 %v564, %v565
      %v567 = vrot.slane %v566, 2
      %v568 = vmax.f32 %v566, %v567
      %v569 = vrot.slane %v568, 1
      %v570 = vmax.f32 %v568, %v569
      %571 = vst.msk [vmem:[%s147 + $0xd] sm:$0x1] %vm179, %v570
      %v572 = vld [vmem:[%s139] sm:$0xff]
      %v573 = vld [vmem:[%s139 + $0x8] sm:$0xff]
      %v574 = vld [vmem:[%s139 + $0x10] sm:$0xff]
      %v575 = vld [vmem:[%s139 + $0x18] sm:$0xff]
      %v576 = vld [vmem:[%s139 + $0x20] sm:$0xff]
      %v577 = vld [vmem:[%s139 + $0x28] sm:$0xff]
      %v578 = vld [vmem:[%s139 + $0x30] sm:$0xff]
      %v579 = vld [vmem:[%s139 + $0x38] sm:$0xff]
      %v580 = vld [vmem:[%s139 + $0x40] sm:$0xff]
      %v581 = vld [vmem:[%s139 + $0x48] sm:$0xff]
      %v582 = vld [vmem:[%s139 + $0x50] sm:$0xff]
      %v583 = vld [vmem:[%s139 + $0x58] sm:$0xff]
      %v584 = vld [vmem:[%s139 + $0x60] sm:$0xff]
      %v585 = vld [vmem:[%s139 + $0x68] sm:$0xff]
      %v586 = vld [vmem:[%s139 + $0x70] sm:$0xff]
      %v587 = vld [vmem:[%s139 + $0x78] sm:$0xff]
      %v588 = vsel %vm156, %v572, -inf
      %v589 = vsel %vm156, %v574, -inf
      %v590 = vsel %vm156, %v576, -inf
      %v591 = vmax.f32 %v588, %v590
      %v592 = vsel %vm156, %v578, -inf
      %v593 = vmax.f32 %v589, %v592
      %v594 = vsel %vm156, %v580, -inf
      %v595 = vmax.f32 %v591, %v594
      %v596 = vsel %vm156, %v582, -inf
      %v597 = vmax.f32 %v593, %v596
      %v598 = vsel %vm156, %v584, -inf
      %v599 = vmax.f32 %v595, %v598
      %v600 = vsel %vm156, %v586, -inf
      %v601 = vmax.f32 %v597, %v600
      %v602 = vmax.f32 %v599, %v601
      %v603 = vsel %vm156, %v573, -inf
      %v604 = vsel %vm156, %v575, -inf
      %v605 = vsel %vm156, %v577, -inf
      %v606 = vmax.f32 %v603, %v605
      %v607 = vsel %vm156, %v579, -inf
      %v608 = vmax.f32 %v604, %v607
      %v609 = vsel %vm156, %v581, -inf
      %v610 = vmax.f32 %v606, %v609
      %v611 = vsel %vm156, %v583, -inf
      %v612 = vmax.f32 %v608, %v611
      %v613 = vsel %vm156, %v585, -inf
      %v614 = vmax.f32 %v610, %v613
      %v615 = vsel %vm156, %v587, -inf
      %v616 = vmax.f32 %v612, %v615
      %v617 = vmax.f32 %v614, %v616
      %v618 = vsel %vm156, %v602, -inf
      %v619 = vrot.slane %v618, 4
      %v620 = vmax.f32 %v618, %v619
      %v621 = vrot.slane %v620, 2
      %v622 = vmax.f32 %v620, %v621
      %v623 = vrot.slane %v622, 1
      %v624 = vmax.f32 %v622, %v623
      %625 = vst.msk [vmem:[%s147 + $0x1] sm:$0x1] %vm179, %v624
      %v626 = vsel %vm156, %v617, -inf
      %v627 = vrot.slane %v626, 4
      %v628 = vmax.f32 %v626, %v627
      %v629 = vrot.slane %v628, 2
      %v630 = vmax.f32 %v628, %v629
      %v631 = vrot.slane %v630, 1
      %v632 = vmax.f32 %v630, %v631
      %633 = vst.msk [vmem:[%s147 + $0x2] sm:$0x1] %vm179, %v632
      %v634 = vld [vmem:[%s268] sm:$0xff]
      %v635 = vld [vmem:[%s268 + $0x8] sm:$0xff]
      %v636 = vld [vmem:[%s268 + $0x10] sm:$0xff]
      %v637 = vld [vmem:[%s268 + $0x18] sm:$0xff]
      %v638 = vld [vmem:[%s268 + $0x20] sm:$0xff]
      %v639 = vld [vmem:[%s268 + $0x28] sm:$0xff]
      %v640 = vld [vmem:[%s268 + $0x30] sm:$0xff]
      %v641 = vld [vmem:[%s268 + $0x38] sm:$0xff]
      %v642 = vld [vmem:[%s268 + $0x40] sm:$0xff]
      %v643 = vld [vmem:[%s268 + $0x48] sm:$0xff]
      %v644 = vld [vmem:[%s268 + $0x50] sm:$0xff]
      %v645 = vld [vmem:[%s268 + $0x58] sm:$0xff]
      %v646 = vld [vmem:[%s268 + $0x60] sm:$0xff]
      %v647 = vld [vmem:[%s268 + $0x68] sm:$0xff]
      %v648 = vld [vmem:[%s268 + $0x70] sm:$0xff]
      %v649 = vld [vmem:[%s268 + $0x78] sm:$0xff]
      %v650 = vsel %vm156, %v634, -inf
      %v651 = vsel %vm156, %v636, -inf
      %v652 = vsel %vm156, %v638, -inf
      %v653 = vmax.f32 %v650, %v652
      %v654 = vsel %vm156, %v640, -inf
      %v655 = vmax.f32 %v651, %v654
      %v656 = vsel %vm156, %v642, -inf
      %v657 = vmax.f32 %v653, %v656
      %v658 = vsel %vm156, %v644, -inf
      %v659 = vmax.f32 %v655, %v658
      %v660 = vsel %vm156, %v646, -inf
      %v661 = vmax.f32 %v657, %v660
      %v662 = vsel %vm156, %v648, -inf
      %v663 = vmax.f32 %v659, %v662
      %v664 = vmax.f32 %v661, %v663
      %v665 = vsel %vm156, %v635, -inf
      %v666 = vsel %vm156, %v637, -inf
      %v667 = vsel %vm156, %v639, -inf
      %v668 = vmax.f32 %v665, %v667
      %v669 = vsel %vm156, %v641, -inf
      %v670 = vmax.f32 %v666, %v669
      %v671 = vsel %vm156, %v643, -inf
      %v672 = vmax.f32 %v668, %v671
      %v673 = vsel %vm156, %v645, -inf
      %v674 = vmax.f32 %v670, %v673
      %v675 = vsel %vm156, %v647, -inf
      %v676 = vmax.f32 %v672, %v675
      %v677 = vsel %vm156, %v649, -inf
      %v678 = vmax.f32 %v674, %v677
      %v679 = vmax.f32 %v676, %v678
      %v680 = vsel %vm156, %v664, -inf
      %v681 = vrot.slane %v680, 4
      %v682 = vmax.f32 %v680, %v681
      %v683 = vrot.slane %v682, 2
      %v684 = vmax.f32 %v682, %v683
      %v685 = vrot.slane %v684, 1
      %v686 = vmax.f32 %v684, %v685
      %687 = vst.msk [vmem:[%s147 + $0x3] sm:$0x1] %vm179, %v686
      %v688 = vsel %vm156, %v679, -inf
      %v689 = vrot.slane %v688, 4
      %v690 = vmax.f32 %v688, %v689
      %v691 = vrot.slane %v690, 2
      %v692 = vmax.f32 %v690, %v691
      %v693 = vrot.slane %v692, 1
      %v694 = vmax.f32 %v692, %v693
      %695 = vst.msk [vmem:[%s147 + $0x4] sm:$0x1] %vm179, %v694
      %696 = vst.msk [vmem:[%s147] sm:$0x1] %vm179, %v385
      %p697 = scmp.lt.s32.totalorder %s16, 1
      %s698 = scalar_select %p697, %s16, 1
      %p699 = scmp.lt.s32.totalorder %s17, 0
      %s700 = scalar_select %p699, %s17, 0
      %s701 = smul.addr %s698, 4
      %s702 = sadd.s32 %s700, %s701
      %s703 = smul.addr %s702, 8
      %s704 = scalar_lea.vmem %s1, %s703
      // Predicated region
      $region25: #{tpu_custom_call.1} parent=23 // pred_check
        %p705 = pneg %p72
      $region26: #{tpu_custom_call.1} parent=23 // pred_check_branch
        %707 = sbr.rel (%p705) target = $region28
      $region27: #{tpu_custom_call.1} parent=23 // pred_region
        _
      $region28: #{tpu_custom_call.1} parent=23 // pred_fallthru
        _
    $region24: #{tpu_custom_call.1} parent=5 // pred_fallthru
      _
    %p708 = scmp.le.s32.totalorder 2, %s7
    // Predicated region
    $region29: #{tpu_custom_call.1} parent=5 // pred_check
      %p709 = pneg %p708
    $region30: #{tpu_custom_call.1} parent=5 // pred_check_branch
      %711 = sbr.rel (%p709) target = $region32
    $region31: #{tpu_custom_call.1} parent=5 // pred_region
      %s712 = ssub.s32 %s7, 2
      // Predicated region
      $region33: #{tpu_custom_call.1} parent=31 // pred_check
        %p713 = pneg %p78
      $region34: #{tpu_custom_call.1} parent=31 // pred_check_branch
        %715 = sbr.rel (%p713) target = $region36
      $region35: #{tpu_custom_call.1} parent=31 // pred_region
        %p716 = scmp.lt.s32.totalorder %s18, 1
        %s717 = scalar_select %p716, %s18, 1
        %p718 = scmp.lt.s32.totalorder %s19, 0
        %s719 = scalar_select %p718, %s19, 0
        %s720 = smul.addr %s717, 4
        %s721 = sadd.s32 %s719, %s720
        %s722 = smul.addr %s721, 8
        %s723 = scalar_lea.vmem %s1, %s722
      $region36: #{tpu_custom_call.1} parent=31 // pred_fallthru
        _
    $region32: #{tpu_custom_call.1} parent=5 // pred_fallthru
      _
  $region6: #{tpu_custom_call.1} parent=0 // loop_footer
    %s11 = sadd.s32 1, %s7
  $region7: #{tpu_custom_call.1} parent=0 // loop_footer_branch
    %6 = sbr.rel target = $region3
  $region8: #{tpu_custom_call.1} parent=0 // loop_exit
    _

</llo_original>
